<compile_context>
chip_gen: v7x
topology: tpu7x:2x2x1
jax: 0.10.0
libtpu: 0.0.40
codegen_flags: <defaults>
</compile_context>

<pallas_src>
import functools

import jax
import jax.numpy as jnp
from jax import lax
from jax.experimental import pallas as pl
from jax.experimental.pallas import tpu as pltpu

# Logical (PyTorch-module) shapes — small demo sizes.
B = 200       # batch (deliberately not a multiple of 128 to exercise masking)
D_IN = 32     # input features
HID = 64      # hidden features
C_OUT = 16    # output features

# TPU-friendly padded shapes (lane-aligned to 128).
D_PAD = 128
H_PAD = 128
C_PAD = 128


def _round_up(x, m):
    return (x + m - 1) // m * m


def model_with_loss_kernel(x_ref, w1_ref, b1_ref, w2_ref, b2_ref, t_ref,
                           loss_ref, *, batch, c_out):
    # ---- model: Linear -> ReLU -> Linear --------------------------------
    # x / w1 / w2 arrive pre-cast to bf16 (MXU-native); accumulation is f32.
    h = jnp.dot(x_ref[...], w1_ref[...], preferred_element_type=jnp.float32)
    h = jnp.maximum(h + b1_ref[...], 0.0)                # bias + ReLU in f32 (VPU)

    out = jnp.dot(h.astype(jnp.bfloat16), w2_ref[...],
                  preferred_element_type=jnp.float32)
    out = out + b2_ref[...]                              # f32, (b_pad, C_PAD)

    # ---- loss_func: MSE (mean) -------------------------------------------
    # Target is un-padded in the feature dim -> static prefix slice of `out`.
    diff = out[:, :c_out] - t_ref[...]                   # (b_pad, c_out)
    sq = diff * diff
    # Mask padded batch rows (padded rows of x are zero, but bias makes the
    # model output there non-zero).
    row_ids = lax.broadcasted_iota(jnp.int32, (sq.shape[0], 1), 0)
    sq = jnp.where(row_ids < batch, sq, 0.0)
    # Normalize by the ORIGINAL batch * c_out (MSELoss reduction='mean').
    loss_ref[0, 0] = jnp.sum(sq) * (1.0 / (batch * c_out))


def prepare_params(w1, b1, w2, b2):
    """Pad + cast parameters once at init (off the per-call critical path)."""
    d_in, hid = w1.shape
    c_out = w2.shape[1]
    w1_p = jnp.pad(w1, ((0, D_PAD - d_in), (0, H_PAD - hid))).astype(jnp.bfloat16)
    b1_p = jnp.pad(b1, (0, H_PAD - hid)).astype(jnp.float32).reshape(1, H_PAD)
    w2_p = jnp.pad(w2, ((0, H_PAD - hid), (0, C_PAD - c_out))).astype(jnp.bfloat16)
    b2_p = jnp.pad(b2, (0, C_PAD - c_out)).astype(jnp.float32).reshape(1, C_PAD)
    return w1_p, b1_p, w2_p, b2_p


def model_with_loss(data, target, w1_p, b1_p, w2_p, b2_p):
    """data: [B, D_IN] f32, target: [B, C_OUT] f32 -> scalar f32 MSE loss."""
    batch, d_in = data.shape
    c_out = target.shape[1]

    # Single-tile batch: pad to the next multiple of 128 and run grid=(1,).
    b_pad = _round_up(batch, 128)

    # Per-call padding: one fused pad (+ bf16 cast for the MXU operand).
    x_p = jnp.pad(data, ((0, b_pad - batch), (0, D_PAD - d_in))).astype(jnp.bfloat16)
    t_p = jnp.pad(target, ((0, b_pad - batch), (0, 0)))      # batch-dim only, f32

    flops = 2 * b_pad * (D_PAD * H_PAD + H_PAD * C_PAD)
    bytes_accessed = (2 * (x_p.size + w1_p.size + w2_p.size)          # bf16
                      + 4 * (b1_p.size + b2_p.size + t_p.size + 1))   # f32

    kernel = functools.partial(model_with_loss_kernel, batch=batch, c_out=c_out)

    loss = pl.pallas_call(
        kernel,
        out_shape=jax.ShapeDtypeStruct((1, 1), jnp.float32),
        grid_spec=pltpu.PrefetchScalarGridSpec(
            num_scalar_prefetch=0,
            grid=(1,),
            in_specs=[
                pl.BlockSpec((b_pad, D_PAD), lambda i: (0, 0)),   # x (bf16)
                pl.BlockSpec((D_PAD, H_PAD), lambda i: (0, 0)),   # w1 (bf16)
                pl.BlockSpec((1, H_PAD), lambda i: (0, 0)),       # b1 (f32)
                pl.BlockSpec((H_PAD, C_PAD), lambda i: (0, 0)),   # w2 (bf16)
                pl.BlockSpec((1, C_PAD), lambda i: (0, 0)),       # b2 (f32)
                pl.BlockSpec((b_pad, c_out), lambda i: (0, 0)),   # target (f32, un-padded lanes)
            ],
            out_specs=pl.BlockSpec((1, 1), lambda i: (0, 0),
                                   memory_space=pltpu.MemorySpace.SMEM),
        ),
        compiler_params=pltpu.CompilerParams(
            dimension_semantics=("arbitrary",),
            vmem_limit_bytes=32 * 1024 * 1024,
        ),
        cost_estimate=pl.CostEstimate(
            flops=flops, transcendentals=0, bytes_accessed=bytes_accessed),
    )(x_p, w1_p, b1_p, w2_p, b2_p, t_p)
    return loss[0, 0]


def reference(data, target, w1, b1, w2, b2):
    h = jnp.maximum(data @ w1 + b1, 0.0)
    out = h @ w2 + b2
    return jnp.mean((out - target) ** 2)


if __name__ == "__main__":
    key = jax.random.PRNGKey(0)
    k_x, k_t, k_w1, k_b1, k_w2, k_b2 = jax.random.split(key, 6)

    # Deterministic synthetic inputs / parameters (no checkpoint loading).
    data = jax.random.normal(k_x, (B, D_IN), dtype=jnp.float32)
    target = jax.random.normal(k_t, (B, C_OUT), dtype=jnp.float32)
    w1 = jax.random.normal(k_w1, (D_IN, HID), dtype=jnp.float32) * 0.1
    b1 = jax.random.normal(k_b1, (HID,), dtype=jnp.float32) * 0.1
    w2 = jax.random.normal(k_w2, (HID, C_OUT), dtype=jnp.float32) * 0.1
    b2 = jax.random.normal(k_b2, (C_OUT,), dtype=jnp.float32) * 0.1

    # Parameter padding / bf16 casting happens once here, not per call.
    w1_p, b1_p, w2_p, b2_p = prepare_params(w1, b1, w2, b2)
    jax.block_until_ready((w1_p, b1_p, w2_p, b2_p))

    loss = jax.jit(model_with_loss)(data, target, w1_p, b1_p, w2_p, b2_p)
    jax.block_until_ready(loss)

    ref = reference(data, target, w1, b1, w2, b2)
    # bf16 MXU operands (f32 accumulation) -> compare against pure-f32 ref
    # with a tolerance that covers bf16 rounding of the matmul operands.
    assert jnp.allclose(loss, ref, rtol=2e-2, atol=2e-2), (loss, ref)

    print("KERNEL_OK")
</pallas_src>

<mosaic_0001>
module attributes {stable_mosaic.version = 11 : i64} {
  func.func @model_with_loss_kernel(%arg0: i32, %arg1: memref<256x128xbf16, #tpu.memory_space<vmem>>, %arg2: memref<128x128xbf16, #tpu.memory_space<vmem>>, %arg3: memref<1x128xf32, #tpu.memory_space<vmem>>, %arg4: memref<128x128xbf16, #tpu.memory_space<vmem>>, %arg5: memref<1x128xf32, #tpu.memory_space<vmem>>, %arg6: memref<256x16xf32, #tpu.memory_space<vmem>>, %arg7: memref<1x1xf32, #tpu.memory_space<smem>>) attributes {dimension_semantics = [#tpu.dimension_semantics<arbitrary>], iteration_bounds = array<i64: 1>, scalar_prefetch = 0 : i64, scratch_operands = 0 : i64, tpu.core_type = #tpu.core_type<tc>, window_params = [{pipeline_mode = #tpu.pipeline_mode<synchronous>, transform_indices = @transform_0, window_bounds = array<i64: 256, 128>}, {pipeline_mode = #tpu.pipeline_mode<synchronous>, transform_indices = @transform_1, window_bounds = array<i64: 128, 128>}, {pipeline_mode = #tpu.pipeline_mode<synchronous>, transform_indices = @transform_2, window_bounds = array<i64: 1, 128>}, {pipeline_mode = #tpu.pipeline_mode<synchronous>, transform_indices = @transform_3, window_bounds = array<i64: 128, 128>}, {pipeline_mode = #tpu.pipeline_mode<synchronous>, transform_indices = @transform_4, window_bounds = array<i64: 1, 128>}, {pipeline_mode = #tpu.pipeline_mode<synchronous>, transform_indices = @transform_5, window_bounds = array<i64: 256, 16>}, {transform_indices = @transform_6, window_bounds = array<i64: 1, 1>}]} {
    %c0 = arith.constant 0 : index
    %c0_0 = arith.constant 0 : index
    %0 = vector.load %arg1[%c0, %c0_0] : memref<256x128xbf16, #tpu.memory_space<vmem>>, vector<256x128xbf16>
    %c0_1 = arith.constant 0 : index
    %c0_2 = arith.constant 0 : index
    %1 = vector.load %arg2[%c0_1, %c0_2] : memref<128x128xbf16, #tpu.memory_space<vmem>>, vector<128x128xbf16>
    %cst = arith.constant dense<0.000000e+00> : vector<256x128xf32>
    %2 = tpu.matmul %0, %1, %cst {dimension_numbers = #tpu.dot_dimension_numbers<[1], [0], [0], [1], [0, 0, 1, 1], [], []>} : vector<256x128xbf16>, vector<128x128xbf16>, vector<256x128xf32> -> vector<256x128xf32>
    %c0_3 = arith.constant 0 : index
    %c0_4 = arith.constant 0 : index
    %3 = vector.load %arg3[%c0_3, %c0_4] : memref<1x128xf32, #tpu.memory_space<vmem>>, vector<1x128xf32>
    %4 = vector.broadcast %3 : vector<1x128xf32> to vector<256x128xf32>
    %5 = arith.addf %2, %4 : vector<256x128xf32>
    %cst_5 = arith.constant 0.000000e+00 : f32
    %6 = vector.broadcast %cst_5 : f32 to vector<256x128xf32>
    %7 = arith.maximumf %5, %6 : vector<256x128xf32>
    %8 = arith.truncf %7 : vector<256x128xf32> to vector<256x128xbf16>
    %c0_6 = arith.constant 0 : index
    %c0_7 = arith.constant 0 : index
    %9 = vector.load %arg4[%c0_6, %c0_7] : memref<128x128xbf16, #tpu.memory_space<vmem>>, vector<128x128xbf16>
    %cst_8 = arith.constant dense<0.000000e+00> : vector<256x128xf32>
    %10 = tpu.matmul %8, %9, %cst_8 {dimension_numbers = #tpu.dot_dimension_numbers<[1], [0], [0], [1], [0, 0, 1, 1], [], []>} : vector<256x128xbf16>, vector<128x128xbf16>, vector<256x128xf32> -> vector<256x128xf32>
    %c0_9 = arith.constant 0 : index
    %c0_10 = arith.constant 0 : index
    %11 = vector.load %arg5[%c0_9, %c0_10] : memref<1x128xf32, #tpu.memory_space<vmem>>, vector<1x128xf32>
    %12 = vector.broadcast %11 : vector<1x128xf32> to vector<256x128xf32>
    %13 = arith.addf %10, %12 : vector<256x128xf32>
    %14 = vector.extract_strided_slice %13 {offsets = [0, 0], sizes = [256, 16], strides = [1, 1]} : vector<256x128xf32> to vector<256x16xf32>
    %c0_11 = arith.constant 0 : index
    %c0_12 = arith.constant 0 : index
    %15 = vector.load %arg6[%c0_11, %c0_12] : memref<256x16xf32, #tpu.memory_space<vmem>>, vector<256x16xf32>
    %16 = arith.subf %14, %15 : vector<256x16xf32>
    %17 = arith.mulf %16, %16 : vector<256x16xf32>
    %18 = tpu.iota {dimensions = array<i32: 0>} : vector<256x1xi32>
    %c200_i32 = arith.constant 200 : i32
    %19 = vector.broadcast %c200_i32 : i32 to vector<256x1xi32>
    %20 = arith.cmpi slt, %18, %19 : vector<256x1xi32>
    %cst_13 = arith.constant 0.000000e+00 : f32
    %21 = vector.shape_cast %20 : vector<256x1xi1> to vector<256x1xi1>
    %22 = vector.broadcast %21 : vector<256x1xi1> to vector<256x16xi1>
    %23 = vector.broadcast %cst_13 : f32 to vector<256x16xf32>
    %24 = arith.select %22, %17, %23 : vector<256x16xi1>, vector<256x16xf32>
    %25 = vector.shape_cast %24 : vector<256x16xf32> to vector<1x256x16xf32>
    %cst_14 = arith.constant dense<0.000000e+00> : vector<1xf32>
    %26 = vector.multi_reduction <add>, %25, %cst_14 [1, 2] : vector<1x256x16xf32> to vector<1xf32>
    %27 = vector.shape_cast %26 : vector<1xf32> to vector<1x1x1xf32>
    %28 = vector.extract %27[0, 0, 0] : f32 from vector<1x1x1xf32>
    %cst_15 = arith.constant 3.125000e-04 : f32
    %29 = arith.mulf %28, %cst_15 : f32
    %c0_16 = arith.constant 0 : index
    %c0_17 = arith.constant 0 : index
    %30 = memref.load %arg7[%c0_16, %c0_17] : memref<1x1xf32, #tpu.memory_space<smem>>
    memref.store %29, %arg7[%c0_16, %c0_17] : memref<1x1xf32, #tpu.memory_space<smem>>
    return
  }
  func.func @transform_0(%arg0: i32) -> (i32, i32) {
    %c0_i32 = arith.constant 0 : i32
    %c0_i32_0 = arith.constant 0 : i32
    %c0_i32_1 = arith.constant 0 : i32
    return %c0_i32, %c0_i32_0 : i32, i32
  }
  func.func @transform_1(%arg0: i32) -> (i32, i32) {
    %c0_i32 = arith.constant 0 : i32
    %c0_i32_0 = arith.constant 0 : i32
    %c0_i32_1 = arith.constant 0 : i32
    return %c0_i32, %c0_i32_0 : i32, i32
  }
  func.func @transform_2(%arg0: i32) -> (i32, i32) {
    %c0_i32 = arith.constant 0 : i32
    %c0_i32_0 = arith.constant 0 : i32
    %c0_i32_1 = arith.constant 0 : i32
    return %c0_i32, %c0_i32_0 : i32, i32
  }
  func.func @transform_3(%arg0: i32) -> (i32, i32) {
    %c0_i32 = arith.constant 0 : i32
    %c0_i32_0 = arith.constant 0 : i32
    %c0_i32_1 = arith.constant 0 : i32
    return %c0_i32, %c0_i32_0 : i32, i32
  }
  func.func @transform_4(%arg0: i32) -> (i32, i32) {
    %c0_i32 = arith.constant 0 : i32
    %c0_i32_0 = arith.constant 0 : i32
    %c0_i32_1 = arith.constant 0 : i32
    return %c0_i32, %c0_i32_0 : i32, i32
  }
  func.func @transform_5(%arg0: i32) -> (i32, i32) {
    %c0_i32 = arith.constant 0 : i32
    %c0_i32_0 = arith.constant 0 : i32
    %c0_i32_1 = arith.constant 0 : i32
    return %c0_i32, %c0_i32_0 : i32, i32
  }
  func.func @transform_6(%arg0: i32) -> (i32, i32) {
    %c0_i32 = arith.constant 0 : i32
    %c0_i32_0 = arith.constant 0 : i32
    %c0_i32_1 = arith.constant 0 : i32
    return %c0_i32, %c0_i32_0 : i32, i32
  }
}

</mosaic_0001>

<llo_original>
// kernel: model_with_loss.1
$region0: #{model_with_loss.1}
  #allocation0 [shape = 'u32[]', space=smem, size = 0x4, offset = 0x4, fixed_abs, tag = 'smem constant byte address 0x4 - core index']
  #allocation1 [shape = 'u32[144,128]{1,0:T(1,128)}', space=vmem, size = 0x12000, scoped, tag = 'internal scratch']
  %s0 = inlined_call_operand.vmem [shape: bf16[256,128], index: 0, kind: input, shape index: {}]
  %s1 = inlined_call_operand.vmem [shape: bf16[128,128], index: 1, kind: input, shape index: {}]
  %s2 = inlined_call_operand.vmem [shape: f32[1,128], index: 2, kind: input, shape index: {}]
  %s3 = inlined_call_operand.vmem [shape: bf16[128,128], index: 3, kind: input, shape index: {}]
  %s4 = inlined_call_operand.vmem [shape: f32[1,128], index: 4, kind: input, shape index: {}]
  %s5 = inlined_call_operand.vmem [shape: f32[256,16], index: 5, kind: input, shape index: {}]
  %s6 = inlined_call_operand.hbm [shape: f32[1,1], index: 6, kind: output, shape index: {}]
  %s7 = sld [smem:[#allocation0]]
  $region34: #{model_with_loss.1} parent=0
    _
  %s9 = ssub.s32 1, %s7
  %s10 = scalar_select 0, %s9, %s7
  $region1: #{model_with_loss.1} parent=0
    #allocation2 [shape = 'u8[512]{0}', space=smem, size = 0x200, scoped, tag = 'output window, operand 0, single buffered']
    #allocation3 [shape = 's32[1]{0}', space=sflag, size = 0x4, scoped, tag = 'scoped memory for model_with_loss.1']
    %11 = vsyncpa [#allocation3], 0
    // Predicated region
    $region2: #{model_with_loss.1} parent=1 // pred_check
      _
    $region3: #{model_with_loss.1} parent=1 // pred_check_branch
      %13 = sbr.rel (0) target = $region5
    $region4: #{model_with_loss.1} parent=1 // pred_region
      _
    $region5: #{model_with_loss.1} parent=1 // pred_fallthru
      _
    // Predicated region
    $region6: #{model_with_loss.1} parent=1 // pred_check
      _
    $region7: #{model_with_loss.1} parent=1 // pred_check_branch
      %15 = sbr.rel (0) target = $region9
    $region8: #{model_with_loss.1} parent=1 // pred_region
      _
    $region9: #{model_with_loss.1} parent=1 // pred_fallthru
      _
    // Predicated region
    $region10: #{model_with_loss.1} parent=1 // pred_check
      _
    $region11: #{model_with_loss.1} parent=1 // pred_check_branch
      %17 = sbr.rel (0) target = $region13
    $region12: #{model_with_loss.1} parent=1 // pred_region
      _
    $region13: #{model_with_loss.1} parent=1 // pred_fallthru
      _
    // Predicated region
    $region14: #{model_with_loss.1} parent=1 // pred_check
      _
    $region15: #{model_with_loss.1} parent=1 // pred_check_branch
      %19 = sbr.rel (0) target = $region17
    $region16: #{model_with_loss.1} parent=1 // pred_region
      _
    $region17: #{model_with_loss.1} parent=1 // pred_fallthru
      _
    // Predicated region
    $region18: #{model_with_loss.1} parent=1 // pred_check
      _
    $region19: #{model_with_loss.1} parent=1 // pred_check_branch
      %21 = sbr.rel (0) target = $region21
    $region20: #{model_with_loss.1} parent=1 // pred_region
      _
    $region21: #{model_with_loss.1} parent=1 // pred_fallthru
      _
    // Predicated region
    $region22: #{model_with_loss.1} parent=1 // pred_check
      _
    $region23: #{model_with_loss.1} parent=1 // pred_check_branch
      %23 = sbr.rel (0) target = $region25
    $region24: #{model_with_loss.1} parent=1 // pred_region
      _
    $region25: #{model_with_loss.1} parent=1 // pred_fallthru
      _
    %v25 = vld [vmem:[%s0] sm:$0xf]
    %v26 = vld [vmem:[%s0 + $0x4] sm:$0xf]
    %v27 = vld [vmem:[%s0 + $0x8] sm:$0xf]
    %v28 = vld [vmem:[%s0 + $0xc] sm:$0xf]
    %v29 = vld [vmem:[%s0 + $0x10] sm:$0xf]
    %v30 = vld [vmem:[%s0 + $0x14] sm:$0xf]
    %v31 = vld [vmem:[%s0 + $0x18] sm:$0xf]
    %v32 = vld [vmem:[%s0 + $0x1c] sm:$0xf]
    %v33 = vld [vmem:[%s0 + $0x20] sm:$0xf]
    %v34 = vld [vmem:[%s0 + $0x24] sm:$0xf]
    %v35 = vld [vmem:[%s0 + $0x28] sm:$0xf]
    %v36 = vld [vmem:[%s0 + $0x2c] sm:$0xf]
    %v37 = vld [vmem:[%s0 + $0x30] sm:$0xf]
    %v38 = vld [vmem:[%s0 + $0x34] sm:$0xf]
    %v39 = vld [vmem:[%s0 + $0x38] sm:$0xf]
    %v40 = vld [vmem:[%s0 + $0x3c] sm:$0xf]
    %v41 = vld [vmem:[%s0 + $0x40] sm:$0xf]
    %v42 = vld [vmem:[%s0 + $0x44] sm:$0xf]
    %v43 = vld [vmem:[%s0 + $0x48] sm:$0xf]
    %v44 = vld [vmem:[%s0 + $0x4c] sm:$0xf]
    %v45 = vld [vmem:[%s0 + $0x50] sm:$0xf]
    %v46 = vld [vmem:[%s0 + $0x54] sm:$0xf]
    %v47 = vld [vmem:[%s0 + $0x58] sm:$0xf]
    %v48 = vld [vmem:[%s0 + $0x5c] sm:$0xf]
    %v49 = vld [vmem:[%s0 + $0x60] sm:$0xf]
    %v50 = vld [vmem:[%s0 + $0x64] sm:$0xf]
    %v51 = vld [vmem:[%s0 + $0x68] sm:$0xf]
    %v52 = vld [vmem:[%s0 + $0x6c] sm:$0xf]
    %v53 = vld [vmem:[%s0 + $0x70] sm:$0xf]
    %v54 = vld [vmem:[%s0 + $0x74] sm:$0xf]
    %v55 = vld [vmem:[%s0 + $0x78] sm:$0xf]
    %v56 = vld [vmem:[%s0 + $0x7c] sm:$0xf]
    %v57 = vld [vmem:[%s1] sm:$0xf]
    %v58 = vld [vmem:[%s1 + $0x4] sm:$0xf]
    %v59 = vld [vmem:[%s1 + $0x8] sm:$0xf]
    %v60 = vld [vmem:[%s1 + $0xc] sm:$0xf]
    %v61 = vld [vmem:[%s1 + $0x10] sm:$0xf]
    %v62 = vld [vmem:[%s1 + $0x14] sm:$0xf]
    %v63 = vld [vmem:[%s1 + $0x18] sm:$0xf]
    %v64 = vld [vmem:[%s1 + $0x1c] sm:$0xf]
    %v65 = vld [vmem:[%s1 + $0x20] sm:$0xf]
    %v66 = vld [vmem:[%s1 + $0x24] sm:$0xf]
    %v67 = vld [vmem:[%s1 + $0x28] sm:$0xf]
    %v68 = vld [vmem:[%s1 + $0x2c] sm:$0xf]
    %v69 = vld [vmem:[%s1 + $0x30] sm:$0xf]
    %v70 = vld [vmem:[%s1 + $0x34] sm:$0xf]
    %v71 = vld [vmem:[%s1 + $0x38] sm:$0xf]
    %v72 = vld [vmem:[%s1 + $0x3c] sm:$0xf]
    %v73 = vld [vmem:[%s2] sm:$0x1]
    %v75 = vlaneseq
    %v76 = vshrl.u32 %v75, 7
    %v77 = vsub.s32 0, %v76
    %v78 = vrot.slane %v73, %v77
    %v112 = vunpack.c.l.b16 %v25
    %v113 = vunpack.c.l.b16 %v26
    %v114 = vunpack.c.l.b16 %v27
    %v115 = vunpack.c.l.b16 %v28
    %v116 = vunpack.c.l.b16 %v29
    %v117 = vunpack.c.l.b16 %v30
    %v118 = vunpack.c.l.b16 %v31
    %v119 = vunpack.c.l.b16 %v32
    %v120 = vunpack.c.l.b16 %v33
    %v121 = vunpack.c.l.b16 %v34
    %v122 = vunpack.c.l.b16 %v35
    %v123 = vunpack.c.l.b16 %v36
    %v124 = vunpack.c.l.b16 %v37
    %v125 = vunpack.c.l.b16 %v38
    %v126 = vunpack.c.l.b16 %v39
    %v127 = vunpack.c.l.b16 %v40
    %v128 = vunpack.c.l.b16 %v41
    %v129 = vunpack.c.l.b16 %v42
    %v130 = vunpack.c.l.b16 %v43
    %v131 = vunpack.c.l.b16 %v44
    %v132 = vunpack.c.l.b16 %v45
    %v133 = vunpack.c.l.b16 %v46
    %v134 = vunpack.c.l.b16 %v47
    %v135 = vunpack.c.l.b16 %v48
    %v136 = vunpack.c.l.b16 %v49
    %v137 = vunpack.c.l.b16 %v50
    %v138 = vunpack.c.l.b16 %v51
    %v139 = vunpack.c.l.b16 %v52
    %v140 = vunpack.c.l.b16 %v53
    %v141 = vunpack.c.l.b16 %v54
    %v142 = vunpack.c.l.b16 %v55
    %v143 = vunpack.c.l.b16 %v56
    %v144 = vpack.c.b16 %v113, %v112
    %v145 = vpack.c.b16 %v115, %v114
    %v146 = vpack.c.b16 %v117, %v116
    %v147 = vpack.c.b16 %v119, %v118
    %v148 = vpack.c.b16 %v121, %v120
    %v149 = vpack.c.b16 %v123, %v122
    %v150 = vpack.c.b16 %v125, %v124
    %v151 = vpack.c.b16 %v127, %v126
    %v152 = vpack.c.b16 %v129, %v128
    %v153 = vpack.c.b16 %v131, %v130
    %v154 = vpack.c.b16 %v133, %v132
    %v155 = vpack.c.b16 %v135, %v134
    %v156 = vpack.c.b16 %v137, %v136
    %v157 = vpack.c.b16 %v139, %v138
    %v158 = vpack.c.b16 %v141, %v140
    %v159 = vpack.c.b16 %v143, %v142
    %v192 = vunpack.c.l.b16 %v57
    %v193 = vunpack.c.l.b16 %v58
    %v194 = vunpack.c.l.b16 %v59
    %v195 = vunpack.c.l.b16 %v60
    %v196 = vunpack.c.l.b16 %v61
    %v197 = vunpack.c.l.b16 %v62
    %v198 = vunpack.c.l.b16 %v63
    %v199 = vunpack.c.l.b16 %v64
    %v200 = vunpack.c.l.b16 %v65
    %v201 = vunpack.c.l.b16 %v66
    %v202 = vunpack.c.l.b16 %v67
    %v203 = vunpack.c.l.b16 %v68
    %v204 = vunpack.c.l.b16 %v69
    %v205 = vunpack.c.l.b16 %v70
    %v206 = vunpack.c.l.b16 %v71
    %v207 = vunpack.c.l.b16 %v72
    %v208 = vpack.c.b16 %v193, %v192
    %v209 = vpack.c.b16 %v195, %v194
    %v210 = vpack.c.b16 %v197, %v196
    %v211 = vpack.c.b16 %v199, %v198
    %v212 = vpack.c.b16 %v201, %v200
    %v213 = vpack.c.b16 %v203, %v202
    %v214 = vpack.c.b16 %v205, %v204
    %v215 = vpack.c.b16 %v207, %v206
    %224 = vmatprep.subr.bf16.mxu0 0
    %225 = vmatpush1.bf16.msra.mxu0 %v208
    %226 = vmatprep.subr.bf16.mxu0 0
    %227 = vmatpush1.bf16.msra.mxu0 %v209
    %228 = vmatprep.subr.bf16.mxu0 0
    %229 = vmatpush1.bf16.msra.mxu0 %v210
    %230 = vmatprep.subr.bf16.mxu0 0
    %231 = vmatpush1.bf16.msra.mxu0 %v211
    %232 = vmatprep.subr.bf16.mxu0 0
    %233 = vmatpush1.bf16.msra.mxu0 %v212
    %234 = vmatprep.subr.bf16.mxu0 0
    %235 = vmatpush1.bf16.msra.mxu0 %v213
    %236 = vmatprep.subr.bf16.mxu0 0
    %237 = vmatpush1.bf16.msra.mxu0 %v214
    %238 = vmatprep.subr.bf16.mxu0 0
    %239 = vmatpush1.bf16.msra.mxu0 %v215
    %240 = vmatprep.subr.bf16.mxu0 0
    %241 = vmatpush1.bf16.msra.mxu0 0
    %242 = vmatprep.subr.bf16.mxu0 0
    %243 = vmatpush1.bf16.msra.mxu0 0
    %244 = vmatprep.subr.bf16.mxu0 0
    %245 = vmatpush1.bf16.msra.mxu0 0
    %246 = vmatprep.subr.bf16.mxu0 0
    %247 = vmatpush1.bf16.msra.mxu0 0
    %248 = vmatprep.subr.bf16.mxu0 0
    %249 = vmatpush1.bf16.msra.mxu0 0
    %250 = vmatprep.subr.bf16.mxu0 0
    %251 = vmatpush1.bf16.msra.mxu0 0
    %252 = vmatprep.subr.bf16.mxu0 0
    %253 = vmatpush1.bf16.msra.mxu0 0
    %254 = vmatprep.subr.bf16.mxu0 0
    %255 = vmatpush1.bf16.msra.mxu0 0
    %256 = vmatprep.mubr.bf16.mxu0 0
    %257 = vmatmul.mubr.bf16.gmra.mrb[0].mxu0 %v144
    %v258 = vpop.f32.mrb[0].mxu0
    %v259 = vadd.f32 %v78, %v258
    %v260 = vpop.f32.mrb[0].mxu0
    %v261 = vpop.f32.mrb[0].mxu0
    %v262 = vadd.f32 %v78, %v261
    %v263 = vpop.f32.mrb[0].mxu0
    %264 = vmatprep.mubr.bf16.mxu0 0
    %265 = vmatmul.mubr.bf16.gmra.mrb[0].mxu0 %v145
    %v266 = vpop.f32.mrb[0].mxu0
    %v267 = vadd.f32 %v78, %v266
    %v268 = vpop.f32.mrb[0].mxu0
    %v269 = vpop.f32.mrb[0].mxu0
    %v270 = vadd.f32 %v78, %v269
    %v271 = vpop.f32.mrb[0].mxu0
    %272 = vmatprep.mubr.bf16.mxu0 0
    %273 = vmatmul.mubr.bf16.gmra.mrb[0].mxu0 %v146
    %v274 = vpop.f32.mrb[0].mxu0
    %v275 = vadd.f32 %v78, %v274
    %v276 = vpop.f32.mrb[0].mxu0
    %v277 = vpop.f32.mrb[0].mxu0
    %v278 = vadd.f32 %v78, %v277
    %v279 = vpop.f32.mrb[0].mxu0
    %280 = vmatprep.mubr.bf16.mxu0 0
    %281 = vmatmul.mubr.bf16.gmra.mrb[0].mxu0 %v147
    %v282 = vpop.f32.mrb[0].mxu0
    %v283 = vadd.f32 %v78, %v282
    %v284 = vpop.f32.mrb[0].mxu0
    %v285 = vpop.f32.mrb[0].mxu0
    %v286 = vadd.f32 %v78, %v285
    %v287 = vpop.f32.mrb[0].mxu0
    %288 = vmatprep.mubr.bf16.mxu0 0
    %289 = vmatmul.mubr.bf16.gmra.mrb[0].mxu0 %v148
    %v290 = vpop.f32.mrb[0].mxu0
    %v291 = vadd.f32 %v78, %v290
    %v292 = vpop.f32.mrb[0].mxu0
    %v293 = vpop.f32.mrb[0].mxu0
    %v294 = vadd.f32 %v78, %v293
    %v295 = vpop.f32.mrb[0].mxu0
    %296 = vmatprep.mubr.bf16.mxu0 0
    %297 = vmatmul.mubr.bf16.gmra.mrb[0].mxu0 %v149
    %v298 = vpop.f32.mrb[0].mxu0
    %v299 = vadd.f32 %v78, %v298
    %v300 = vpop.f32.mrb[0].mxu0
    %v301 = vpop.f32.mrb[0].mxu0
    %v302 = vadd.f32 %v78, %v301
    %v303 = vpop.f32.mrb[0].mxu0
    %304 = vmatprep.mubr.bf16.mxu0 0
    %305 = vmatmul.mubr.bf16.gmra.mrb[0].mxu0 %v150
    %v306 = vpop.f32.mrb[0].mxu0
    %v307 = vadd.f32 %v78, %v306
    %v308 = vpop.f32.mrb[0].mxu0
    %v309 = vpop.f32.mrb[0].mxu0
    %v310 = vadd.f32 %v78, %v309
    %v311 = vpop.f32.mrb[0].mxu0
    %312 = vmatprep.mubr.bf16.mxu0 0
    %313 = vmatmul.mubr.bf16.gmra.mrb[0].mxu0 %v151
    %v314 = vpop.f32.mrb[0].mxu0
    %v315 = vadd.f32 %v78, %v314
    %v316 = vpop.f32.mrb[0].mxu0
    %v317 = vpop.f32.mrb[0].mxu0
    %v318 = vadd.f32 %v78, %v317
    %v319 = vpop.f32.mrb[0].mxu0
    %320 = vmatprep.mubr.bf16.mxu0 0
    %321 = vmatmul.mubr.bf16.gmra.mrb[0].mxu0 %v152
    %v322 = vpop.f32.mrb[0].mxu0
    %v323 = vadd.f32 %v78, %v322
    %v324 = vpop.f32.mrb[0].mxu0
    %v325 = vpop.f32.mrb[0].mxu0
    %v326 = vadd.f32 %v78, %v325
    %v327 = vpop.f32.mrb[0].mxu0
    %328 = vmatprep.mubr.bf16.mxu0 0
    %329 = vmatmul.mubr.bf16.gmra.mrb[0].mxu0 %v153
    %v330 = vpop.f32.mrb[0].mxu0
    %v331 = vadd.f32 %v78, %v330
    %v332 = vpop.f32.mrb[0].mxu0
    %v333 = vpop.f32.mrb[0].mxu0
    %v334 = vadd.f32 %v78, %v333
    %v335 = vpop.f32.mrb[0].mxu0
    %336 = vmatprep.mubr.bf16.mxu0 0
    %337 = vmatmul.mubr.bf16.gmra.mrb[0].mxu0 %v154
    %v338 = vpop.f32.mrb[0].mxu0
    %v339 = vadd.f32 %v78, %v338
    %v340 = vpop.f32.mrb[0].mxu0
    %v341 = vpop.f32.mrb[0].mxu0
    %v342 = vadd.f32 %v78, %v341
    %v343 = vpop.f32.mrb[0].mxu0
    %344 = vmatprep.mubr.bf16.mxu0 0
    %345 = vmatmul.mubr.bf16.gmra.mrb[0].mxu0 %v155
    %v346 = vpop.f32.mrb[0].mxu0
    %v347 = vadd.f32 %v78, %v346
    %v348 = vpop.f32.mrb[0].mxu0
    %v349 = vpop.f32.mrb[0].mxu0
    %v350 = vadd.f32 %v78, %v349
    %v351 = vpop.f32.mrb[0].mxu0
    %352 = vmatprep.mubr.bf16.mxu0 0
    %353 = vmatmul.mubr.bf16.gmra.mrb[0].mxu0 %v156
    %v354 = vpop.f32.mrb[0].mxu0
    %v355 = vadd.f32 %v78, %v354
    %v356 = vpop.f32.mrb[0].mxu0
    %v357 = vpop.f32.mrb[0].mxu0
    %v358 = vadd.f32 %v78, %v357
    %v359 = vpop.f32.mrb[0].mxu0
    %360 = vmatprep.mubr.bf16.mxu0 0
    %361 = vmatmul.mubr.bf16.gmra.mrb[0].mxu0 %v157
    %v362 = vpop.f32.mrb[0].mxu0
    %v363 = vadd.f32 %v78, %v362
    %v364 = vpop.f32.mrb[0].mxu0
    %v365 = vpop.f32.mrb[0].mxu0
    %v366 = vadd.f32 %v78, %v365
    %v367 = vpop.f32.mrb[0].mxu0
    %368 = vmatprep.mubr.bf16.mxu0 0
    %369 = vmatmul.mubr.bf16.gmra.mrb[0].mxu0 %v158
    %v370 = vpop.f32.mrb[0].mxu0
    %v371 = vadd.f32 %v78, %v370
    %v372 = vpop.f32.mrb[0].mxu0
    %v373 = vpop.f32.mrb[0].mxu0
    %v374 = vadd.f32 %v78, %v373
    %v375 = vpop.f32.mrb[0].mxu0
    %376 = vmatprep.mubr.bf16.mxu0 0
    %377 = vmatmul.mubr.bf16.gmra.mrb[0].mxu0 %v159
    %v378 = vpop.f32.mrb[0].mxu0
    %v379 = vadd.f32 %v78, %v378
    %v380 = vpop.f32.mrb[0].mxu0
    %v381 = vpop.f32.mrb[0].mxu0
    %v382 = vadd.f32 %v78, %v381
    %v383 = vpop.f32.mrb[0].mxu0
    %384 = vdwg.mxu0
    %v385 = vmax.f32 %v259, 0.0
    %v386 = vmax.f32 %v262, 0.0
    %v387 = vmax.f32 %v267, 0.0
    %v388 = vmax.f32 %v270, 0.0
    %v389 = vmax.f32 %v275, 0.0
    %v390 = vmax.f32 %v278, 0.0
    %v391 = vmax.f32 %v283, 0.0
    %v392 = vmax.f32 %v286, 0.0
    %v393 = vmax.f32 %v291, 0.0
    %v394 = vmax.f32 %v294, 0.0
    %v395 = vmax.f32 %v299, 0.0
    %v396 = vmax.f32 %v302, 0.0
    %v397 = vmax.f32 %v307, 0.0
    %v398 = vmax.f32 %v310, 0.0
    %v399 = vmax.f32 %v315, 0.0
    %v400 = vmax.f32 %v318, 0.0
    %v401 = vmax.f32 %v323, 0.0
    %v402 = vmax.f32 %v326, 0.0
    %v403 = vmax.f32 %v331, 0.0
    %v404 = vmax.f32 %v334, 0.0
    %v405 = vmax.f32 %v339, 0.0
    %v406 = vmax.f32 %v342, 0.0
    %v407 = vmax.f32 %v347, 0.0
    %v408 = vmax.f32 %v350, 0.0
    %v409 = vmax.f32 %v355, 0.0
    %v410 = vmax.f32 %v358, 0.0
    %v411 = vmax.f32 %v363, 0.0
    %v412 = vmax.f32 %v366, 0.0
    %v413 = vmax.f32 %v371, 0.0
    %v414 = vmax.f32 %v374, 0.0
    %v415 = vmax.f32 %v379, 0.0
    %v416 = vmax.f32 %v382, 0.0
    %v417 = vpack.c.bf16 %v386, %v385
    %v418 = vpack.c.bf16 %v388, %v387
    %v419 = vpack.c.bf16 %v390, %v389
    %v420 = vpack.c.bf16 %v392, %v391
    %v421 = vpack.c.bf16 %v394, %v393
    %v422 = vpack.c.bf16 %v396, %v395
    %v423 = vpack.c.bf16 %v398, %v397
    %v424 = vpack.c.bf16 %v400, %v399
    %v425 = vpack.c.bf16 %v402, %v401
    %v426 = vpack.c.bf16 %v404, %v403
    %v427 = vpack.c.bf16 %v406, %v405
    %v428 = vpack.c.bf16 %v408, %v407
    %v429 = vpack.c.bf16 %v410, %v409
    %v430 = vpack.c.bf16 %v412, %v411
    %v431 = vpack.c.bf16 %v414, %v413
    %v432 = vpack.c.bf16 %v416, %v415
    %v433 = vld [vmem:[%s3] sm:$0xf]
    %v434 = vld [vmem:[%s3 + $0x4] sm:$0xf]
    %v435 = vld [vmem:[%s3 + $0x8] sm:$0xf]
    %v436 = vld [vmem:[%s3 + $0xc] sm:$0xf]
    %v437 = vld [vmem:[%s3 + $0x10] sm:$0xf]
    %v438 = vld [vmem:[%s3 + $0x14] sm:$0xf]
    %v439 = vld [vmem:[%s3 + $0x18] sm:$0xf]
    %v440 = vld [vmem:[%s3 + $0x1c] sm:$0xf]
    %v441 = vld [vmem:[%s3 + $0x20] sm:$0xf]
    %v442 = vld [vmem:[%s3 + $0x24] sm:$0xf]
    %v443 = vld [vmem:[%s3 + $0x28] sm:$0xf]
    %v444 = vld [vmem:[%s3 + $0x2c] sm:$0xf]
    %v445 = vld [vmem:[%s3 + $0x30] sm:$0xf]
    %v446 = vld [vmem:[%s3 + $0x34] sm:$0xf]
    %v447 = vld [vmem:[%s3 + $0x38] sm:$0xf]
    %v448 = vld [vmem:[%s3 + $0x3c] sm:$0xf]
    %v449 = vld [vmem:[%s4] sm:$0x1]
    %v451 = vlaneseq
    %v452 = vshrl.u32 %v451, 7
    %v453 = vsub.s32 0, %v452
    %v454 = vrot.slane %v449, %v453
    %v472 = vunpack.c.l.b16 %v433
    %v473 = vunpack.c.l.b16 %v434
    %v474 = vunpack.c.l.b16 %v435
    %v475 = vunpack.c.l.b16 %v436
    %v476 = vunpack.c.l.b16 %v437
    %v477 = vunpack.c.l.b16 %v438
    %v478 = vunpack.c.l.b16 %v439
    %v479 = vunpack.c.l.b16 %v440
    %v480 = vunpack.c.l.b16 %v441
    %v481 = vunpack.c.l.b16 %v442
    %v482 = vunpack.c.l.b16 %v443
    %v483 = vunpack.c.l.b16 %v444
    %v484 = vunpack.c.l.b16 %v445
    %v485 = vunpack.c.l.b16 %v446
    %v486 = vunpack.c.l.b16 %v447
    %v487 = vunpack.c.l.b16 %v448
    %v488 = vpack.c.b16 %v473, %v472
    %v489 = vpack.c.b16 %v475, %v474
    %v490 = vpack.c.b16 %v477, %v476
    %v491 = vpack.c.b16 %v479, %v478
    %v492 = vpack.c.b16 %v481, %v480
    %v493 = vpack.c.b16 %v483, %v482
    %v494 = vpack.c.b16 %v485, %v484
    %v495 = vpack.c.b16 %v487, %v486
    %504 = vmatprep.subr.bf16.mxu0 0
    %505 = vmatpush1.bf16.msra.mxu0 %v488
    %506 = vmatprep.subr.bf16.mxu0 0
    %507 = vmatpush1.bf16.msra.mxu0 %v489
    %508 = vmatprep.subr.bf16.mxu0 0
    %509 = vmatpush1.bf16.msra.mxu0 %v490
    %510 = vmatprep.subr.bf16.mxu0 0
    %511 = vmatpush1.bf16.msra.mxu0 %v491
    %512 = vmatprep.subr.bf16.mxu0 0
    %513 = vmatpush1.bf16.msra.mxu0 %v492
    %514 = vmatprep.subr.bf16.mxu0 0
    %515 = vmatpush1.bf16.msra.mxu0 %v493
    %516 = vmatprep.subr.bf16.mxu0 0
    %517 = vmatpush1.bf16.msra.mxu0 %v494
    %518 = vmatprep.subr.bf16.mxu0 0
    %519 = vmatpush1.bf16.msra.mxu0 %v495
    %520 = vmatprep.subr.bf16.mxu0 0
    %521 = vmatpush1.bf16.msra.mxu0 0
    %522 = vmatprep.subr.bf16.mxu0 0
    %523 = vmatpush1.bf16.msra.mxu0 0
    %524 = vmatprep.subr.bf16.mxu0 0
    %525 = vmatpush1.bf16.msra.mxu0 0
    %526 = vmatprep.subr.bf16.mxu0 0
    %527 = vmatpush1.bf16.msra.mxu0 0
    %528 = vmatprep.subr.bf16.mxu0 0
    %529 = vmatpush1.bf16.msra.mxu0 0
    %530 = vmatprep.subr.bf16.mxu0 0
    %531 = vmatpush1.bf16.msra.mxu0 0
    %532 = vmatprep.subr.bf16.mxu0 0
    %533 = vmatpush1.bf16.msra.mxu0 0
    %534 = vmatprep.subr.bf16.mxu0 0
    %535 = vmatpush1.bf16.msra.mxu0 0
    %536 = vmatprep.mubr.bf16.mxu0 0
    %537 = vmatmul.mubr.bf16.gmra.mrb[0].mxu0 %v417
    %v538 = vpop.f32.mrb[0].mxu0
    %v539 = vadd.f32 %v454, %v538
    %v540 = vpop.f32.mrb[0].mxu0
    %v541 = vpop.f32.mrb[0].mxu0
    %v542 = vadd.f32 %v454, %v541
    %v543 = vpop.f32.mrb[0].mxu0
    %544 = vmatprep.mubr.bf16.mxu0 0
    %545 = vmatmul.mubr.bf16.gmra.mrb[0].mxu0 %v418
    %v546 = vpop.f32.mrb[0].mxu0
    %v547 = vadd.f32 %v454, %v546
    %v548 = vpop.f32.mrb[0].mxu0
    %v549 = vpop.f32.mrb[0].mxu0
    %v550 = vadd.f32 %v454, %v549
    %v551 = vpop.f32.mrb[0].mxu0
    %552 = vmatprep.mubr.bf16.mxu0 0
    %553 = vmatmul.mubr.bf16.gmra.mrb[0].mxu0 %v419
    %v554 = vpop.f32.mrb[0].mxu0
    %v555 = vadd.f32 %v454, %v554
    %v556 = vpop.f32.mrb[0].mxu0
    %v557 = vpop.f32.mrb[0].mxu0
    %v558 = vadd.f32 %v454, %v557
    %v559 = vpop.f32.mrb[0].mxu0
    %560 = vmatprep.mubr.bf16.mxu0 0
    %561 = vmatmul.mubr.bf16.gmra.mrb[0].mxu0 %v420
    %v562 = vpop.f32.mrb[0].mxu0
    %v563 = vadd.f32 %v454, %v562
    %v564 = vpop.f32.mrb[0].mxu0
    %v565 = vpop.f32.mrb[0].mxu0
    %v566 = vadd.f32 %v454, %v565
    %v567 = vpop.f32.mrb[0].mxu0
    %568 = vmatprep.mubr.bf16.mxu0 0
    %569 = vmatmul.mubr.bf16.gmra.mrb[0].mxu0 %v421
    %v570 = vpop.f32.mrb[0].mxu0
    %v571 = vadd.f32 %v454, %v570
    %v572 = vpop.f32.mrb[0].mxu0
    %v573 = vpop.f32.mrb[0].mxu0
    %v574 = vadd.f32 %v454, %v573
    %v575 = vpop.f32.mrb[0].mxu0
    %576 = vmatprep.mubr.bf16.mxu0 0
    %577 = vmatmul.mubr.bf16.gmra.mrb[0].mxu0 %v422
    %v578 = vpop.f32.mrb[0].mxu0
    %v579 = vadd.f32 %v454, %v578
    %v580 = vpop.f32.mrb[0].mxu0
    %v581 = vpop.f32.mrb[0].mxu0
    %v582 = vadd.f32 %v454, %v581
    %v583 = vpop.f32.mrb[0].mxu0
    %584 = vmatprep.mubr.bf16.mxu0 0
    %585 = vmatmul.mubr.bf16.gmra.mrb[0].mxu0 %v423
    %v586 = vpop.f32.mrb[0].mxu0
    %v587 = vadd.f32 %v454, %v586
    %v588 = vpop.f32.mrb[0].mxu0
    %v589 = vpop.f32.mrb[0].mxu0
    %v590 = vadd.f32 %v454, %v589
    %v591 = vpop.f32.mrb[0].mxu0
    %592 = vmatprep.mubr.bf16.mxu0 0
    %593 = vmatmul.mubr.bf16.gmra.mrb[0].mxu0 %v424
    %v594 = vpop.f32.mrb[0].mxu0
    %v595 = vadd.f32 %v454, %v594
    %v596 = vpop.f32.mrb[0].mxu0
    %v597 = vpop.f32.mrb[0].mxu0
    %v598 = vadd.f32 %v454, %v597
    %v599 = vpop.f32.mrb[0].mxu0
    %600 = vmatprep.mubr.bf16.mxu0 0
    %601 = vmatmul.mubr.bf16.gmra.mrb[0].mxu0 %v425
    %v602 = vpop.f32.mrb[0].mxu0
    %v603 = vadd.f32 %v454, %v602
    %v604 = vpop.f32.mrb[0].mxu0
    %v605 = vpop.f32.mrb[0].mxu0
    %v606 = vadd.f32 %v454, %v605
    %v607 = vpop.f32.mrb[0].mxu0
    %608 = vmatprep.mubr.bf16.mxu0 0
    %609 = vmatmul.mubr.bf16.gmra.mrb[0].mxu0 %v426
    %v610 = vpop.f32.mrb[0].mxu0
    %v611 = vadd.f32 %v454, %v610
    %v612 = vpop.f32.mrb[0].mxu0
    %v613 = vpop.f32.mrb[0].mxu0
    %v614 = vadd.f32 %v454, %v613
    %v615 = vpop.f32.mrb[0].mxu0
    %616 = vmatprep.mubr.bf16.mxu0 0
    %617 = vmatmul.mubr.bf16.gmra.mrb[0].mxu0 %v427
    %v618 = vpop.f32.mrb[0].mxu0
    %v619 = vadd.f32 %v454, %v618
    %v620 = vpop.f32.mrb[0].mxu0
    %v621 = vpop.f32.mrb[0].mxu0
    %v622 = vadd.f32 %v454, %v621
    %v623 = vpop.f32.mrb[0].mxu0
    %624 = vmatprep.mubr.bf16.mxu0 0
    %625 = vmatmul.mubr.bf16.gmra.mrb[0].mxu0 %v428
    %v626 = vpop.f32.mrb[0].mxu0
    %v627 = vadd.f32 %v454, %v626
    %v628 = vpop.f32.mrb[0].mxu0
    %v629 = vpop.f32.mrb[0].mxu0
    %v630 = vadd.f32 %v454, %v629
    %v631 = vpop.f32.mrb[0].mxu0
    %632 = vmatprep.mubr.bf16.mxu0 0
    %633 = vmatmul.mubr.bf16.gmra.mrb[0].mxu0 %v429
    %v634 = vpop.f32.mrb[0].mxu0
    %v635 = vadd.f32 %v454, %v634
    %v636 = vpop.f32.mrb[0].mxu0
    %v637 = vpop.f32.mrb[0].mxu0
    %v638 = vadd.f32 %v454, %v637
    %v639 = vpop.f32.mrb[0].mxu0
    %640 = vmatprep.mubr.bf16.mxu0 0
    %641 = vmatmul.mubr.bf16.gmra.mrb[0].mxu0 %v430
    %v642 = vpop.f32.mrb[0].mxu0
    %v643 = vadd.f32 %v454, %v642
    %v644 = vpop.f32.mrb[0].mxu0
    %v645 = vpop.f32.mrb[0].mxu0
    %v646 = vadd.f32 %v454, %v645
    %v647 = vpop.f32.mrb[0].mxu0
    %648 = vmatprep.mubr.bf16.mxu0 0
    %649 = vmatmul.mubr.bf16.gmra.mrb[0].mxu0 %v431
    %v650 = vpop.f32.mrb[0].mxu0
    %v651 = vadd.f32 %v454, %v650
    %v652 = vpop.f32.mrb[0].mxu0
    %v653 = vpop.f32.mrb[0].mxu0
    %v654 = vadd.f32 %v454, %v653
    %v655 = vpop.f32.mrb[0].mxu0
    %656 = vmatprep.mubr.bf16.mxu0 0
    %657 = vmatmul.mubr.bf16.gmra.mrb[0].mxu0 %v432
    %v658 = vpop.f32.mrb[0].mxu0
    %v659 = vadd.f32 %v454, %v658
    %v660 = vpop.f32.mrb[0].mxu0
    %v661 = vpop.f32.mrb[0].mxu0
    %v662 = vadd.f32 %v454, %v661
    %v663 = vpop.f32.mrb[0].mxu0
    %664 = vdwg.mxu0
    %v665 = vld [vmem:[%s5] sm:$0xff]
    %v666 = vld [vmem:[%s5 + $0x8] sm:$0xff]
    %v667 = vld [vmem:[%s5 + $0x10] sm:$0xff]
    %v668 = vld [vmem:[%s5 + $0x18] sm:$0xff]
    %v669 = vld [vmem:[%s5 + $0x20] sm:$0xff]
    %v670 = vld [vmem:[%s5 + $0x28] sm:$0xff]
    %v671 = vld [vmem:[%s5 + $0x30] sm:$0xff]
    %v672 = vld [vmem:[%s5 + $0x38] sm:$0xff]
    %v673 = vld [vmem:[%s5 + $0x40] sm:$0xff]
    %v674 = vld [vmem:[%s5 + $0x48] sm:$0xff]
    %v675 = vld [vmem:[%s5 + $0x50] sm:$0xff]
    %v676 = vld [vmem:[%s5 + $0x58] sm:$0xff]
    %v677 = vld [vmem:[%s5 + $0x60] sm:$0xff]
    %v678 = vld [vmem:[%s5 + $0x68] sm:$0xff]
    %v679 = vld [vmem:[%s5 + $0x70] sm:$0xff]
    %v680 = vld [vmem:[%s5 + $0x78] sm:$0xff]
    %v681 = vld [vmem:[%s5 + $0x80] sm:$0xff]
    %v682 = vld [vmem:[%s5 + $0x88] sm:$0xff]
    %v683 = vld [vmem:[%s5 + $0x90] sm:$0xff]
    %v684 = vld [vmem:[%s5 + $0x98] sm:$0xff]
    %v685 = vld [vmem:[%s5 + $0xa0] sm:$0xff]
    %v686 = vld [vmem:[%s5 + $0xa8] sm:$0xff]
    %v687 = vld [vmem:[%s5 + $0xb0] sm:$0xff]
    %v688 = vld [vmem:[%s5 + $0xb8] sm:$0xff]
    %v689 = vld [vmem:[%s5 + $0xc0] sm:$0xff]
    %v690 = vld [vmem:[%s5 + $0xc8] sm:$0xff]
    %v691 = vld [vmem:[%s5 + $0xd0] sm:$0xff]
    %v692 = vld [vmem:[%s5 + $0xd8] sm:$0xff]
    %v693 = vld [vmem:[%s5 + $0xe0] sm:$0xff]
    %v694 = vld [vmem:[%s5 + $0xe8] sm:$0xff]
    %v695 = vld [vmem:[%s5 + $0xf0] sm:$0xff]
    %v696 = vld [vmem:[%s5 + $0xf8] sm:$0xff]
    %v697 = vsub.f32 %v539, %v665
    %v698 = vsub.f32 %v542, %v666
    %v699 = vsub.f32 %v547, %v667
    %v700 = vsub.f32 %v550, %v668
    %v701 = vsub.f32 %v555, %v669
    %v702 = vsub.f32 %v558, %v670
    %v703 = vsub.f32 %v563, %v671
    %v704 = vsub.f32 %v566, %v672
    %v705 = vsub.f32 %v571, %v673
    %v706 = vsub.f32 %v574, %v674
    %v707 = vsub.f32 %v579, %v675
    %v708 = vsub.f32 %v582, %v676
    %v709 = vsub.f32 %v587, %v677
    %v710 = vsub.f32 %v590, %v678
    %v711 = vsub.f32 %v595, %v679
    %v712 = vsub.f32 %v598, %v680
    %v713 = vsub.f32 %v603, %v681
    %v714 = vsub.f32 %v606, %v682
    %v715 = vsub.f32 %v611, %v683
    %v716 = vsub.f32 %v614, %v684
    %v717 = vsub.f32 %v619, %v685
    %v718 = vsub.f32 %v622, %v686
    %v719 = vsub.f32 %v627, %v687
    %v720 = vsub.f32 %v630, %v688
    %v721 = vsub.f32 %v635, %v689
    %v722 = vsub.f32 %v638, %v690
    %v723 = vsub.f32 %v643, %v691
    %v724 = vsub.f32 %v646, %v692
    %v725 = vsub.f32 %v651, %v693
    %v726 = vsub.f32 %v654, %v694
    %v727 = vsub.f32 %v659, %v695
    %v728 = vsub.f32 %v662, %v696
    %v729 = vmul.f32 %v697, %v697
    %v730 = vmul.f32 %v698, %v698
    %v731 = vmul.f32 %v699, %v699
    %v732 = vmul.f32 %v700, %v700
    %v733 = vmul.f32 %v701, %v701
    %v734 = vmul.f32 %v702, %v702
    %v735 = vmul.f32 %v703, %v703
    %v736 = vmul.f32 %v704, %v704
    %v737 = vmul.f32 %v705, %v705
    %v738 = vmul.f32 %v706, %v706
    %v739 = vmul.f32 %v707, %v707
    %v740 = vmul.f32 %v708, %v708
    %v741 = vmul.f32 %v709, %v709
    %v742 = vmul.f32 %v710, %v710
    %v743 = vmul.f32 %v711, %v711
    %v744 = vmul.f32 %v712, %v712
    %v745 = vmul.f32 %v713, %v713
    %v746 = vmul.f32 %v714, %v714
    %v747 = vmul.f32 %v715, %v715
    %v748 = vmul.f32 %v716, %v716
    %v749 = vmul.f32 %v717, %v717
    %v750 = vmul.f32 %v718, %v718
    %v751 = vmul.f32 %v719, %v719
    %v752 = vmul.f32 %v720, %v720
    %v753 = vmul.f32 %v721, %v721
    %v754 = vmul.f32 %v722, %v722
    %v755 = vmul.f32 %v723, %v723
    %v756 = vmul.f32 %v724, %v724
    %v757 = vmul.f32 %v725, %v725
    %v758 = vmul.f32 %v726, %v726
    %v759 = vmul.f32 %v727, %v727
    %v760 = vmul.f32 %v728, %v728
    %v761 = vlaneseq
    %v762 = vshrl.u32 %v761, 7
    %v763 = vadd.s32 %v762, 8
    %v764 = vadd.s32 %v762, 16
    %v765 = vadd.s32 %v762, 24
    %v766 = vadd.s32 %v762, 32
    %v767 = vadd.s32 %v762, 40
    %v768 = vadd.s32 %v762, 48
    %v769 = vadd.s32 %v762, 56
    %v770 = vadd.s32 %v762, 64
    %v771 = vadd.s32 %v762, 72
    %v772 = vadd.s32 %v762, 80
    %v773 = vadd.s32 %v762, 88
    %v774 = vadd.s32 %v762, 96
    %v775 = vadd.s32 %v762, 104
    %v776 = vadd.s32 %v762, 112
    %v777 = vadd.s32 %v762, 120
    %v778 = vadd.s32 %v762, 128
    %v779 = vadd.s32 %v762, 136
    %v780 = vadd.s32 %v762, 144
    %v781 = vadd.s32 %v762, 152
    %v782 = vadd.s32 %v762, 160
    %v783 = vadd.s32 %v762, 168
    %v784 = vadd.s32 %v762, 176
    %v785 = vadd.s32 %v762, 184
    %v786 = vadd.s32 %v762, 192
    %v787 = vadd.s32 %v762, 200
    %v788 = vadd.s32 %v762, 208
    %v789 = vadd.s32 %v762, 216
    %v790 = vadd.s32 %v762, 224
    %v791 = vadd.s32 %v762, 232
    %v792 = vadd.s32 %v762, 240
    %v793 = vadd.s32 %v762, 248
    %vm794 = vcmp.lt.s32.totalorder %v762, 200
    %vm795 = vcmp.lt.s32.totalorder %v763, 200
    %vm796 = vcmp.lt.s32.totalorder %v764, 200
    %vm797 = vcmp.lt.s32.totalorder %v765, 200
    %vm798 = vcmp.lt.s32.totalorder %v766, 200
    %vm799 = vcmp.lt.s32.totalorder %v767, 200
    %vm800 = vcmp.lt.s32.totalorder %v768, 200
    %vm801 = vcmp.lt.s32.totalorder %v769, 200
    %vm802 = vcmp.lt.s32.totalorder %v770, 200
    %vm803 = vcmp.lt.s32.totalorder %v771, 200
    %vm804 = vcmp.lt.s32.totalorder %v772, 200
    %vm805 = vcmp.lt.s32.totalorder %v773, 200
    %vm806 = vcmp.lt.s32.totalorder %v774, 200
    %vm807 = vcmp.lt.s32.totalorder %v775, 200
    %vm808 = vcmp.lt.s32.totalorder %v776, 200
    %vm809 = vcmp.lt.s32.totalorder %v777, 200
    %vm810 = vcmp.lt.s32.totalorder %v778, 200
    %vm811 = vcmp.lt.s32.totalorder %v779, 200
    %vm812 = vcmp.lt.s32.totalorder %v780, 200
    %vm813 = vcmp.lt.s32.totalorder %v781, 200
    %vm814 = vcmp.lt.s32.totalorder %v782, 200
    %vm815 = vcmp.lt.s32.totalorder %v783, 200
    %vm816 = vcmp.lt.s32.totalorder %v784, 200
    %vm817 = vcmp.lt.s32.totalorder %v785, 200
    %vm818 = vcmp.lt.s32.totalorder %v786, 200
    %vm819 = vcmp.lt.s32.totalorder %v787, 200
    %vm820 = vcmp.lt.s32.totalorder %v788, 200
    %vm821 = vcmp.lt.s32.totalorder %v789, 200
    %vm822 = vcmp.lt.s32.totalorder %v790, 200
    %vm823 = vcmp.lt.s32.totalorder %v791, 200
    %vm824 = vcmp.lt.s32.totalorder %v792, 200
    %vm825 = vcmp.lt.s32.totalorder %v793, 200
    %v826 = vsel %vm794, 1, 0
    %v827 = vsel %vm795, 1, 0
    %v828 = vsel %vm796, 1, 0
    %v829 = vsel %vm797, 1, 0
    %v830 = vsel %vm798, 1, 0
    %v831 = vsel %vm799, 1, 0
    %v832 = vsel %vm800, 1, 0
    %v833 = vsel %vm801, 1, 0
    %v834 = vsel %vm802, 1, 0
    %v835 = vsel %vm803, 1, 0
    %v836 = vsel %vm804, 1, 0
    %v837 = vsel %vm805, 1, 0
    %v838 = vsel %vm806, 1, 0
    %v839 = vsel %vm807, 1, 0
    %v840 = vsel %vm808, 1, 0
    %v841 = vsel %vm809, 1, 0
    %v842 = vsel %vm810, 1, 0
    %v843 = vsel %vm811, 1, 0
    %v844 = vsel %vm812, 1, 0
    %v845 = vsel %vm813, 1, 0
    %v846 = vsel %vm814, 1, 0
    %v847 = vsel %vm815, 1, 0
    %v848 = vsel %vm816, 1, 0
    %v849 = vsel %vm817, 1, 0
    %v850 = vsel %vm818, 1, 0
    %v851 = vsel %vm819, 1, 0
    %v852 = vsel %vm820, 1, 0
    %v853 = vsel %vm821, 1, 0
    %v854 = vsel %vm822, 1, 0
    %v855 = vsel %vm823, 1, 0
    %v856 = vsel %vm824, 1, 0
    %v857 = vsel %vm825, 1, 0
    %vm858 = vcmp.eq.s32.totalorder %v826, 1
    %vm859 = vcmp.eq.s32.totalorder %v827, 1
    %vm860 = vcmp.eq.s32.totalorder %v828, 1
    %vm861 = vcmp.eq.s32.totalorder %v829, 1
    %vm862 = vcmp.eq.s32.totalorder %v830, 1
    %vm863 = vcmp.eq.s32.totalorder %v831, 1
    %vm864 = vcmp.eq.s32.totalorder %v832, 1
    %vm865 = vcmp.eq.s32.totalorder %v833, 1
    %vm866 = vcmp.eq.s32.totalorder %v834, 1
    %vm867 = vcmp.eq.s32.totalorder %v835, 1
    %vm868 = vcmp.eq.s32.totalorder %v836, 1
    %vm869 = vcmp.eq.s32.totalorder %v837, 1
    %vm870 = vcmp.eq.s32.totalorder %v838, 1
    %vm871 = vcmp.eq.s32.totalorder %v839, 1
    %vm872 = vcmp.eq.s32.totalorder %v840, 1
    %vm873 = vcmp.eq.s32.totalorder %v841, 1
    %vm874 = vcmp.eq.s32.totalorder %v842, 1
    %vm875 = vcmp.eq.s32.totalorder %v843, 1
    %vm876 = vcmp.eq.s32.totalorder %v844, 1
    %vm877 = vcmp.eq.s32.totalorder %v845, 1
    %vm878 = vcmp.eq.s32.totalorder %v846, 1
    %vm879 = vcmp.eq.s32.totalorder %v847, 1
    %vm880 = vcmp.eq.s32.totalorder %v848, 1
    %vm881 = vcmp.eq.s32.totalorder %v849, 1
    %vm882 = vcmp.eq.s32.totalorder %v850, 1
    %vm883 = vcmp.eq.s32.totalorder %v851, 1
    %vm884 = vcmp.eq.s32.totalorder %v852, 1
    %vm885 = vcmp.eq.s32.totalorder %v853, 1
    %vm886 = vcmp.eq.s32.totalorder %v854, 1
    %vm887 = vcmp.eq.s32.totalorder %v855, 1
    %vm888 = vcmp.eq.s32.totalorder %v856, 1
    %vm889 = vcmp.eq.s32.totalorder %v857, 1
    %v890 = vsel %vm858, %v729, 0.0
    %v891 = vsel %vm859, %v730, 0.0
    %v892 = vsel %vm860, %v731, 0.0
    %v893 = vsel %vm861, %v732, 0.0
    %v894 = vsel %vm862, %v733, 0.0
    %v895 = vsel %vm863, %v734, 0.0
    %v896 = vsel %vm864, %v735, 0.0
    %v897 = vsel %vm865, %v736, 0.0
    %v898 = vsel %vm866, %v737, 0.0
    %v899 = vsel %vm867, %v738, 0.0
    %v900 = vsel %vm868, %v739, 0.0
    %v901 = vsel %vm869, %v740, 0.0
    %v902 = vsel %vm870, %v741, 0.0
    %v903 = vsel %vm871, %v742, 0.0
    %v904 = vsel %vm872, %v743, 0.0
    %v905 = vsel %vm873, %v744, 0.0
    %v906 = vsel %vm874, %v745, 0.0
    %v907 = vsel %vm875, %v746, 0.0
    %v908 = vsel %vm876, %v747, 0.0
    %v909 = vsel %vm877, %v748, 0.0
    %v910 = vsel %vm878, %v749, 0.0
    %v911 = vsel %vm879, %v750, 0.0
    %v912 = vsel %vm880, %v751, 0.0
    %v913 = vsel %vm881, %v752, 0.0
    %v914 = vsel %vm882, %v753, 0.0
    %v915 = vsel %vm883, %v754, 0.0
    %v916 = vsel %vm884, %v755, 0.0
    %v917 = vsel %vm885, %v756, 0.0
    %v918 = vsel %vm886, %v757, 0.0
    %v919 = vsel %vm887, %v758, 0.0
    %v920 = vsel %vm888, %v759, 0.0
    %v921 = vsel %vm889, %v760, 0.0
    %vm922 = vcmask 130048
    %v923 = vsel %vm922, %v890, 0.0
    %v924 = vsel %vm922, %v891, 0.0
    %v925 = vadd.f32 %v923, %v924
    %v926 = vsel %vm922, %v892, 0.0
    %v927 = vadd.f32 %v925, %v926
    %v928 = vsel %vm922, %v893, 0.0
    %v929 = vadd.f32 %v927, %v928
    %v930 = vsel %vm922, %v894, 0.0
    %v931 = vadd.f32 %v929, %v930
    %v932 = vsel %vm922, %v895, 0.0
    %v933 = vadd.f32 %v931, %v932
    %v934 = vsel %vm922, %v896, 0.0
    %v935 = vadd.f32 %v933, %v934
    %v936 = vsel %vm922, %v897, 0.0
    %v937 = vadd.f32 %v935, %v936
    %v938 = vsel %vm922, %v898, 0.0
    %v939 = vadd.f32 %v937, %v938
    %v940 = vsel %vm922, %v899, 0.0
    %v941 = vadd.f32 %v939, %v940
    %v942 = vsel %vm922, %v900, 0.0
    %v943 = vadd.f32 %v941, %v942
    %v944 = vsel %vm922, %v901, 0.0
    %v945 = vadd.f32 %v943, %v944
    %v946 = vsel %vm922, %v902, 0.0
    %v947 = vadd.f32 %v945, %v946
    %v948 = vsel %vm922, %v903, 0.0
    %v949 = vadd.f32 %v947, %v948
    %v950 = vsel %vm922, %v904, 0.0
    %v951 = vadd.f32 %v949, %v950
    %v952 = vsel %vm922, %v905, 0.0
    %v953 = vadd.f32 %v951, %v952
    %v954 = vsel %vm922, %v906, 0.0
    %v955 = vadd.f32 %v953, %v954
    %v956 = vsel %vm922, %v907, 0.0
    %v957 = vadd.f32 %v955, %v956
    %v958 = vsel %vm922, %v908, 0.0
    %v959 = vadd.f32 %v957, %v958
    %v960 = vsel %vm922, %v909, 0.0
    %v961 = vadd.f32 %v959, %v960
    %v962 = vsel %vm922, %v910, 0.0
    %v963 = vadd.f32 %v961, %v962
    %v964 = vsel %vm922, %v911, 0.0
    %v965 = vadd.f32 %v963, %v964
    %v966 = vsel %vm922, %v912, 0.0
    %v967 = vadd.f32 %v965, %v966
    %v968 = vsel %vm922, %v913, 0.0
    %v969 = vadd.f32 %v967, %v968
    %v970 = vsel %vm922, %v914, 0.0
    %v971 = vadd.f32 %v969, %v970
    %v972 = vsel %vm922, %v915, 0.0
    %v973 = vadd.f32 %v971, %v972
    %v974 = vsel %vm922, %v916, 0.0
    %v975 = vadd.f32 %v973, %v974
    %v976 = vsel %vm922, %v917, 0.0
    %v977 = vadd.f32 %v975, %v976
    %v978 = vsel %vm922, %v918, 0.0
    %v979 = vadd.f32 %v977, %v978
    %v980 = vsel %vm922, %v919, 0.0
    %v981 = vadd.f32 %v979, %v980
    %v982 = vsel %vm922, %v920, 0.0
    %v983 = vadd.f32 %v981, %v982
    %v984 = vsel %vm922, %v921, 0.0
    %v985 = vadd.f32 %v983, %v984
    %986 = vadd.xlane.f32.xlu0 %v985
    %v987 = vpop.xlane.xlu0 %986
    %v988 = vrot.slane %v987, 4
    %v989 = vadd.f32 %v987, %v988
    %v990 = vrot.slane %v989, 2
    %v991 = vadd.f32 %v989, %v990
    %v992 = vrot.slane %v991, 1
    %v993 = vadd.f32 %v991, %v992
    %s994 = vtos %v993
    %s995 = smul.f32 %s994, 0.0003125
    %s996 = scalar_lea.smem [#allocation2], 0
    %997 = sst [smem:[%s996]] %s995
    // Predicated region
    $region26: #{model_with_loss.1} parent=1 // pred_check
      _
    $region27: #{model_with_loss.1} parent=1 // pred_check_branch
      %999 = sbr.rel (0) target = $region29
    $region28: #{model_with_loss.1} parent=1 // pred_region
      %s1001 = ssub.s32 16, 16
      %1002 = vsyncadd [#allocation3], %s1001
      %1005 = dma.smem_to_hbm [#allocation2], 16, %s6, [#allocation3]
    $region29: #{model_with_loss.1} parent=1 // pred_fallthru
      _
    // Predicated region
    $region30: #{model_with_loss.1} parent=1 // pred_check
      _
    $region31: #{model_with_loss.1} parent=1 // pred_check_branch
      %1007 = sbr.rel (0) target = $region33
    $region32: #{model_with_loss.1} parent=1 // pred_region
      %1008 = dma.done [#allocation3], 16
    $region33: #{model_with_loss.1} parent=1 // pred_fallthru
      _
    %1009 = sfence
    %1010 = vsyncpa [#allocation3], 1

</llo_original>
